<compile_context>
chip_gen: v7x
topology: tpu7x:2x2x1
jax: 0.10.0
libtpu: 0.0.40
codegen_flags: <defaults>
</compile_context>

<pallas_src>
import math

import jax
import jax.numpy as jnp
from jax.experimental import pallas as pl
from jax.experimental.pallas import tpu as pltpu

# ---------------- model dimensions (small, consistent with the module) ----------------
B = 4                # batch size
OBS = 32             # obs_shape (int -> FCEncoder)
ENC = [64, 64, 32]   # encoder_hidden_size_list
HEAD = 32            # actor/critic head hidden size (== ENC[-1])
ACT = 8              # action_shape (discrete logits)

PAD = 128            # lane-padded feature width for every hidden layer
NW = 5               # number of fused layers in the packed weight slab
BIAS_ROW0 = 64       # bias rows live at W[4][64:69, :]
TB_MAX = 512         # batch-tile cap (per review: ~85% of HBM roofline at 512 rows)


def _cdiv(a, b):
    return -(-a // b)


def _round_up(a, b):
    return _cdiv(a, b) * b


def _num_tensorcores_per_chip():
    """2 on v7x (megacore sharding exists), 1 on v5e/v6e. Defensive on CPU/interpret."""
    try:
        kind = jax.devices()[0].device_kind.lower()
    except Exception:
        return 1
    return 2 if ("v7" in kind or "7x" in kind) else 1


def _batch_tiling(bsz):
    """Balanced batch tiles: pad only to a multiple of 8, tiles <= TB_MAX, and on a
    2-TC chip force >= 2 grid steps (when the batch allows) so "parallel" shards."""
    bp8 = _round_up(bsz, 8)
    min_tiles = 2 if (_num_tensorcores_per_chip() >= 2 and bp8 >= 16) else 1
    n_tiles = max(_cdiv(bp8, TB_MAX), min_tiles)
    tb = _round_up(_cdiv(bp8, n_tiles), 8)
    bp = n_tiles * tb
    return tb, bp, n_tiles


# ---------------------------------- kernel ----------------------------------
def _vac_kernel(x_ref, w_ref, out_ref):
    """Fused VAC forward on one (TB, OBS) batch tile.

    x_ref   : (TB, OBS) f32   unpadded observations
    w_ref   : (5, 128, 128) bf16 packed weight slab
              slot 0..2 = encoder layers, slot 3 = fused actor/critic hidden layer,
              slot 4   = fused block-diagonal final layer + bias rows at sublanes 64..68
    out_ref : (TB, 128) f32   lanes 0..ACT-1 = logits, lane ACT = value, rest = 0
    """
    f32 = jnp.float32
    bf16 = jnp.bfloat16

    def bias(i):  # (1, 128) f32 bias row for fused-layer slot i
        return w_ref[4, BIAS_ROW0 + i:BIAS_ROW0 + i + 1, :].astype(f32)

    # --- FCEncoder layer 0: unpadded obs (K = OBS) ---
    h = jnp.dot(x_ref[...].astype(bf16), w_ref[0, :OBS, :],
                preferred_element_type=f32)
    h = jnp.maximum(h + bias(0), 0.0)

    # --- FCEncoder layers 1, 2 (lane-padded to 128) ---
    for i in (1, 2):
        h = jnp.dot(h.astype(bf16), w_ref[i], preferred_element_type=f32)
        h = jnp.maximum(h + bias(i), 0.0)

    # --- fused actor/critic hidden layer: one matmul gives [a | c | 0...] ---
    ac = jnp.dot(h.astype(bf16), w_ref[3], preferred_element_type=f32)
    ac = jnp.maximum(ac + bias(3), 0.0)

    # --- fused block-diagonal final layer: [logit (0:ACT) | value (lane ACT) | 0...] ---
    # ac lanes >= 2*HEAD are exactly zero, so the bias rows stashed at W[4][64:69, :]
    # contribute nothing to this matmul.
    out = jnp.dot(ac.astype(bf16), w_ref[4], preferred_element_type=f32)
    out_ref[...] = out + bias(4)


# --------------------------------- wrapper ----------------------------------
def vac_forward_pallas(x, w_slab):
    """compute_actor_critic: returns {'logit': (B, ACT), 'value': (B,)}."""
    bsz = x.shape[0]
    tb, bp, n_tiles = _batch_tiling(bsz)

    x = x.astype(jnp.float32)
    if bp != bsz:
        x = jnp.pad(x, ((0, bp - bsz), (0, 0)))   # small row pad only, no lane pad

    flops = 2 * bp * PAD * (OBS + 4 * PAD)
    bytes_accessed = bp * OBS * 4 + NW * PAD * PAD * 2 + bp * PAD * 4

    out = pl.pallas_call(
        _vac_kernel,
        out_shape=jax.ShapeDtypeStruct((bp, PAD), jnp.float32),
        grid=(n_tiles,),
        in_specs=[
            # batch-tiled, unpadded obs: last block dim == full array dim (OBS)
            pl.BlockSpec((tb, OBS), lambda i: (i, 0)),
            # grid-invariant weight slab: single-buffered resident VMEM copy
            pl.BlockSpec((NW, PAD, PAD), lambda i: (0, 0, 0),
                         pipeline_mode=pl.Buffered(1)),
        ],
        out_specs=pl.BlockSpec((tb, PAD), lambda i: (i, 0)),   # lane-dense output slab
        compiler_params=pltpu.CompilerParams(
            dimension_semantics=("parallel",)),
        cost_estimate=pl.CostEstimate(
            flops=flops, transcendentals=0, bytes_accessed=bytes_accessed),
    )(x, w_slab)

    # Single slice of the fused slab, then split the tiny (bsz, ACT+1) array.
    fused = out[:bsz, :ACT + 1]
    return {"logit": fused[:, :ACT], "value": fused[:, ACT]}


# ---------------- parameter construction (emulates torch.nn.Linear default init) ----------------
def _linear_init(key, fan_in, fan_out):
    """Uniform +-1/sqrt(fan_in); weight stored (in, out) so y = x @ W + b."""
    k = 1.0 / math.sqrt(fan_in)
    kw, kb = jax.random.split(key)
    w = jax.random.uniform(kw, (fan_in, fan_out), jnp.float32, minval=-k, maxval=k)
    b = jax.random.uniform(kb, (1, fan_out), jnp.float32, minval=-k, maxval=k)
    return w, b


def make_params(key):
    keys = jax.random.split(key, 7)
    w0, b0 = _linear_init(keys[0], OBS, ENC[0])       # encoder.init
    w1, b1 = _linear_init(keys[1], ENC[0], ENC[1])    # encoder.main[0]
    w2, b2 = _linear_init(keys[2], ENC[1], ENC[2])    # encoder.main[2]
    wa0, ba0 = _linear_init(keys[3], HEAD, HEAD)      # actor_head MLP
    wa1, ba1 = _linear_init(keys[4], HEAD, ACT)       # actor_head final linear
    wc0, bc0 = _linear_init(keys[5], HEAD, HEAD)      # critic_head MLP
    wc1, bc1 = _linear_init(keys[6], HEAD, 1)         # critic_head last linear
    return (w0, b0, w1, b1, w2, b2, wa0, ba0, wa1, ba1, wc0, bc0, wc1, bc1)


def pack_params(params):
    """Pack all 14 params into one bf16 (5,128,128) weight slab.

    Slot 3 fuses the actor/critic hidden layers ([a | c]); slot 4 is block-diagonal
    so a single matmul emits [logit | value] lane-dense.  The 5 bias rows are stashed
    in W[4] sublanes 64..68 (safe because `ac` lanes >= 2*HEAD are exactly zero).
    """
    (w0, b0, w1, b1, w2, b2, wa0, ba0, wa1, ba1, wc0, bc0, wc1, bc1) = params
    W = jnp.zeros((NW, PAD, PAD), jnp.float32)

    # encoder layers
    W = W.at[0, :OBS, :ENC[0]].set(w0)
    W = W.at[1, :ENC[0], :ENC[1]].set(w1)
    W = W.at[2, :ENC[1], :ENC[2]].set(w2)

    # fused head hidden layer: actor in lanes 0:HEAD, critic in lanes HEAD:2*HEAD
    W = W.at[3, :HEAD, :HEAD].set(wa0)
    W = W.at[3, :HEAD, HEAD:2 * HEAD].set(wc0)

    # fused block-diagonal final layer: logits in lanes 0:ACT, value in lane ACT
    W = W.at[4, :HEAD, :ACT].set(wa1)
    W = W.at[4, HEAD:2 * HEAD, ACT:ACT + 1].set(wc1)

    # bias rows (fused-layer slots 0..4) stashed at W[4] sublanes 64..68
    W = W.at[4, BIAS_ROW0 + 0, :ENC[0]].set(b0[0])
    W = W.at[4, BIAS_ROW0 + 1, :ENC[1]].set(b1[0])
    W = W.at[4, BIAS_ROW0 + 2, :ENC[2]].set(b2[0])
    W = W.at[4, BIAS_ROW0 + 3, :HEAD].set(ba0[0])
    W = W.at[4, BIAS_ROW0 + 3, HEAD:2 * HEAD].set(bc0[0])
    W = W.at[4, BIAS_ROW0 + 4, :ACT].set(ba1[0])
    W = W.at[4, BIAS_ROW0 + 4, ACT].set(bc1[0, 0])

    # Load-bearing invariant: ac lanes >= 2*HEAD must be exactly zero so the bias
    # stash rows (>= 64) never contribute to the final matmul.
    assert 2 * HEAD <= BIAS_ROW0
    assert bool(jnp.all(W[3, :, 2 * HEAD:] == 0.0))
    assert bool(jnp.all(W[4, BIAS_ROW0 + 3, 2 * HEAD:] == 0.0))

    return W.astype(jnp.bfloat16)


# ---------------- pure-JAX references for correctness checking ----------------
def vac_forward_ref_bf16(x, params):
    """Emulates the kernel's numerics: bf16 operands (weights, activations, biases),
    f32 accumulation — should match the Pallas kernel nearly bit-exactly."""
    bf, f32 = jnp.bfloat16, jnp.float32
    (w0, b0, w1, b1, w2, b2, wa0, ba0, wa1, ba1, wc0, bc0, wc1, bc1) = params

    def lin(h, w, b):
        return (jnp.dot(h.astype(bf), w.astype(bf), preferred_element_type=f32)
                + b.astype(bf).astype(f32))

    h = jnp.maximum(lin(x, w0, b0), 0.0)
    h = jnp.maximum(lin(h, w1, b1), 0.0)
    h = jnp.maximum(lin(h, w2, b2), 0.0)
    a = jnp.maximum(lin(h, wa0, ba0), 0.0)
    logit = lin(a, wa1, ba1)
    c = jnp.maximum(lin(h, wc0, bc0), 0.0)
    value = lin(c, wc1, bc1)[:, 0]
    return {"logit": logit, "value": value}


def vac_forward_ref_f32(x, params):
    """Exact f32 reference (the original module's math), for a loose sanity check."""
    (w0, b0, w1, b1, w2, b2, wa0, ba0, wa1, ba1, wc0, bc0, wc1, bc1) = params
    h = jnp.maximum(x @ w0 + b0, 0.0)
    h = jnp.maximum(h @ w1 + b1, 0.0)
    h = jnp.maximum(h @ w2 + b2, 0.0)
    a = jnp.maximum(h @ wa0 + ba0, 0.0)
    logit = a @ wa1 + ba1
    c = jnp.maximum(h @ wc0 + bc0, 0.0)
    value = (c @ wc1 + bc1)[:, 0]
    return {"logit": logit, "value": value}


if __name__ == "__main__":
    key = jax.random.PRNGKey(0)
    k_x, k_p = jax.random.split(key)
    x = jax.random.normal(k_x, (B, OBS), jnp.float32)
    params = make_params(k_p)
    w_slab = pack_params(params)

    out = vac_forward_pallas(x, w_slab)
    jax.block_until_ready(out)

    assert out["logit"].shape == (B, ACT)
    assert out["value"].shape == (B,)

    # apples-to-apples (bf16-operand) reference: tight tolerance
    ref_bf16 = vac_forward_ref_bf16(x, params)
    assert jnp.allclose(out["logit"], ref_bf16["logit"], atol=1e-4, rtol=1e-4)
    assert jnp.allclose(out["value"], ref_bf16["value"], atol=1e-4, rtol=1e-4)

    # exact f32 module math: loose sanity tolerance (bf16 operand quantization)
    ref_f32 = vac_forward_ref_f32(x, params)
    assert jnp.allclose(out["logit"], ref_f32["logit"], atol=0.1, rtol=0.1)
    assert jnp.allclose(out["value"], ref_f32["value"], atol=0.1, rtol=0.1)

    print("KERNEL_OK")
</pallas_src>

<mosaic_0001>
module attributes {stable_mosaic.version = 11 : i64} {
  func.func @_vac_kernel(%arg0: i32, %arg1: memref<8x32xf32, #tpu.memory_space<vmem>>, %arg2: memref<5x128x128xbf16, #tpu.memory_space<vmem>>, %arg3: memref<8x128xf32, #tpu.memory_space<vmem>>) attributes {dimension_semantics = [#tpu.dimension_semantics<parallel>], iteration_bounds = array<i64: 1>, scalar_prefetch = 0 : i64, scratch_operands = 0 : i64, tpu.core_type = #tpu.core_type<tc>, window_params = [{transform_indices = @transform_0, window_bounds = array<i64: 8, 32>}, {pipeline_mode = #tpu.pipeline_mode<synchronous>, transform_indices = @transform_1, window_bounds = array<i64: 5, 128, 128>}, {transform_indices = @transform_2, window_bounds = array<i64: 8, 128>}]} {
    %c0 = arith.constant 0 : index
    %c0_0 = arith.constant 0 : index
    %0 = vector.load %arg1[%c0, %c0_0] : memref<8x32xf32, #tpu.memory_space<vmem>>, vector<8x32xf32>
    %1 = arith.truncf %0 : vector<8x32xf32> to vector<8x32xbf16>
    %c0_1 = arith.constant 0 : index
    %c0_2 = arith.constant 0 : index
    %c0_3 = arith.constant 0 : index
    %2 = vector.load %arg2[%c0_1, %c0_2, %c0_3] : memref<5x128x128xbf16, #tpu.memory_space<vmem>>, vector<1x32x128xbf16>
    %3 = vector.shape_cast %2 : vector<1x32x128xbf16> to vector<32x128xbf16>
    %cst = arith.constant dense<0.000000e+00> : vector<8x128xf32>
    %4 = tpu.matmul %1, %3, %cst {dimension_numbers = #tpu.dot_dimension_numbers<[1], [0], [0], [1], [0, 0, 1, 1], [], []>} : vector<8x32xbf16>, vector<32x128xbf16>, vector<8x128xf32> -> vector<8x128xf32>
    %c4 = arith.constant 4 : index
    %c64 = arith.constant 64 : index
    %c0_4 = arith.constant 0 : index
    %5 = vector.load %arg2[%c4, %c64, %c0_4] : memref<5x128x128xbf16, #tpu.memory_space<vmem>>, vector<1x1x128xbf16>
    %6 = vector.shape_cast %5 : vector<1x1x128xbf16> to vector<1x128xbf16>
    %7 = arith.extf %6 : vector<1x128xbf16> to vector<1x128xf32>
    %8 = vector.broadcast %7 : vector<1x128xf32> to vector<8x128xf32>
    %9 = arith.addf %4, %8 : vector<8x128xf32>
    %cst_5 = arith.constant 0.000000e+00 : f32
    %10 = vector.broadcast %cst_5 : f32 to vector<8x128xf32>
    %11 = arith.maximumf %9, %10 : vector<8x128xf32>
    %12 = arith.truncf %11 : vector<8x128xf32> to vector<8x128xbf16>
    %c1 = arith.constant 1 : index
    %c0_6 = arith.constant 0 : index
    %c0_7 = arith.constant 0 : index
    %13 = vector.load %arg2[%c1, %c0_6, %c0_7] : memref<5x128x128xbf16, #tpu.memory_space<vmem>>, vector<1x128x128xbf16>
    %14 = vector.shape_cast %13 : vector<1x128x128xbf16> to vector<128x128xbf16>
    %cst_8 = arith.constant dense<0.000000e+00> : vector<8x128xf32>
    %15 = tpu.matmul %12, %14, %cst_8 {dimension_numbers = #tpu.dot_dimension_numbers<[1], [0], [0], [1], [0, 0, 1, 1], [], []>} : vector<8x128xbf16>, vector<128x128xbf16>, vector<8x128xf32> -> vector<8x128xf32>
    %c4_9 = arith.constant 4 : index
    %c65 = arith.constant 65 : index
    %c0_10 = arith.constant 0 : index
    %16 = vector.load %arg2[%c4_9, %c65, %c0_10] : memref<5x128x128xbf16, #tpu.memory_space<vmem>>, vector<1x1x128xbf16>
    %17 = vector.shape_cast %16 : vector<1x1x128xbf16> to vector<1x128xbf16>
    %18 = arith.extf %17 : vector<1x128xbf16> to vector<1x128xf32>
    %19 = vector.broadcast %18 : vector<1x128xf32> to vector<8x128xf32>
    %20 = arith.addf %15, %19 : vector<8x128xf32>
    %cst_11 = arith.constant 0.000000e+00 : f32
    %21 = vector.broadcast %cst_11 : f32 to vector<8x128xf32>
    %22 = arith.maximumf %20, %21 : vector<8x128xf32>
    %23 = arith.truncf %22 : vector<8x128xf32> to vector<8x128xbf16>
    %c2 = arith.constant 2 : index
    %c0_12 = arith.constant 0 : index
    %c0_13 = arith.constant 0 : index
    %24 = vector.load %arg2[%c2, %c0_12, %c0_13] : memref<5x128x128xbf16, #tpu.memory_space<vmem>>, vector<1x128x128xbf16>
    %25 = vector.shape_cast %24 : vector<1x128x128xbf16> to vector<128x128xbf16>
    %cst_14 = arith.constant dense<0.000000e+00> : vector<8x128xf32>
    %26 = tpu.matmul %23, %25, %cst_14 {dimension_numbers = #tpu.dot_dimension_numbers<[1], [0], [0], [1], [0, 0, 1, 1], [], []>} : vector<8x128xbf16>, vector<128x128xbf16>, vector<8x128xf32> -> vector<8x128xf32>
    %c4_15 = arith.constant 4 : index
    %c66 = arith.constant 66 : index
    %c0_16 = arith.constant 0 : index
    %27 = vector.load %arg2[%c4_15, %c66, %c0_16] : memref<5x128x128xbf16, #tpu.memory_space<vmem>>, vector<1x1x128xbf16>
    %28 = vector.shape_cast %27 : vector<1x1x128xbf16> to vector<1x128xbf16>
    %29 = arith.extf %28 : vector<1x128xbf16> to vector<1x128xf32>
    %30 = vector.broadcast %29 : vector<1x128xf32> to vector<8x128xf32>
    %31 = arith.addf %26, %30 : vector<8x128xf32>
    %cst_17 = arith.constant 0.000000e+00 : f32
    %32 = vector.broadcast %cst_17 : f32 to vector<8x128xf32>
    %33 = arith.maximumf %31, %32 : vector<8x128xf32>
    %34 = arith.truncf %33 : vector<8x128xf32> to vector<8x128xbf16>
    %c3 = arith.constant 3 : index
    %c0_18 = arith.constant 0 : index
    %c0_19 = arith.constant 0 : index
    %35 = vector.load %arg2[%c3, %c0_18, %c0_19] : memref<5x128x128xbf16, #tpu.memory_space<vmem>>, vector<1x128x128xbf16>
    %36 = vector.shape_cast %35 : vector<1x128x128xbf16> to vector<128x128xbf16>
    %cst_20 = arith.constant dense<0.000000e+00> : vector<8x128xf32>
    %37 = tpu.matmul %34, %36, %cst_20 {dimension_numbers = #tpu.dot_dimension_numbers<[1], [0], [0], [1], [0, 0, 1, 1], [], []>} : vector<8x128xbf16>, vector<128x128xbf16>, vector<8x128xf32> -> vector<8x128xf32>
    %c4_21 = arith.constant 4 : index
    %c67 = arith.constant 67 : index
    %c0_22 = arith.constant 0 : index
    %38 = vector.load %arg2[%c4_21, %c67, %c0_22] : memref<5x128x128xbf16, #tpu.memory_space<vmem>>, vector<1x1x128xbf16>
    %39 = vector.shape_cast %38 : vector<1x1x128xbf16> to vector<1x128xbf16>
    %40 = arith.extf %39 : vector<1x128xbf16> to vector<1x128xf32>
    %41 = vector.broadcast %40 : vector<1x128xf32> to vector<8x128xf32>
    %42 = arith.addf %37, %41 : vector<8x128xf32>
    %cst_23 = arith.constant 0.000000e+00 : f32
    %43 = vector.broadcast %cst_23 : f32 to vector<8x128xf32>
    %44 = arith.maximumf %42, %43 : vector<8x128xf32>
    %45 = arith.truncf %44 : vector<8x128xf32> to vector<8x128xbf16>
    %c4_24 = arith.constant 4 : index
    %c0_25 = arith.constant 0 : index
    %c0_26 = arith.constant 0 : index
    %46 = vector.load %arg2[%c4_24, %c0_25, %c0_26] : memref<5x128x128xbf16, #tpu.memory_space<vmem>>, vector<1x128x128xbf16>
    %47 = vector.shape_cast %46 : vector<1x128x128xbf16> to vector<128x128xbf16>
    %cst_27 = arith.constant dense<0.000000e+00> : vector<8x128xf32>
    %48 = tpu.matmul %45, %47, %cst_27 {dimension_numbers = #tpu.dot_dimension_numbers<[1], [0], [0], [1], [0, 0, 1, 1], [], []>} : vector<8x128xbf16>, vector<128x128xbf16>, vector<8x128xf32> -> vector<8x128xf32>
    %c4_28 = arith.constant 4 : index
    %c68 = arith.constant 68 : index
    %c0_29 = arith.constant 0 : index
    %49 = vector.load %arg2[%c4_28, %c68, %c0_29] : memref<5x128x128xbf16, #tpu.memory_space<vmem>>, vector<1x1x128xbf16>
    %50 = vector.shape_cast %49 : vector<1x1x128xbf16> to vector<1x128xbf16>
    %51 = arith.extf %50 : vector<1x128xbf16> to vector<1x128xf32>
    %52 = vector.broadcast %51 : vector<1x128xf32> to vector<8x128xf32>
    %53 = arith.addf %48, %52 : vector<8x128xf32>
    %c0_30 = arith.constant 0 : index
    %c0_31 = arith.constant 0 : index
    %54 = vector.load %arg3[%c0_30, %c0_31] : memref<8x128xf32, #tpu.memory_space<vmem>>, vector<8x128xf32>
    tpu.vector_store %arg3[%c0_30, %c0_31], %53 {strides = array<i32>} : memref<8x128xf32, #tpu.memory_space<vmem>>, vector<8x128xf32>,
    return
  }
  func.func @transform_0(%arg0: i32) -> (i32, i32) {
    %c0_i32 = arith.constant 0 : i32
    %c0_i32_0 = arith.constant 0 : i32
    return %arg0, %c0_i32 : i32, i32
  }
  func.func @transform_1(%arg0: i32) -> (i32, i32, i32) {
    %c0_i32 = arith.constant 0 : i32
    %c0_i32_0 = arith.constant 0 : i32
    %c0_i32_1 = arith.constant 0 : i32
    %c0_i32_2 = arith.constant 0 : i32
    return %c0_i32, %c0_i32_0, %c0_i32_1 : i32, i32, i32
  }
  func.func @transform_2(%arg0: i32) -> (i32, i32) {
    %c0_i32 = arith.constant 0 : i32
    %c0_i32_0 = arith.constant 0 : i32
    return %arg0, %c0_i32 : i32, i32
  }
}

</mosaic_0001>

<llo_original>
// kernel: tpu_custom_call.1
$region0: #{tpu_custom_call.1}
  #allocation0 [shape = 'u32[]', space=smem, size = 0x4, offset = 0x4, fixed_abs, tag = 'smem constant byte address 0x4 - core index']
  #allocation1 [shape = 'u32[144,128]{1,0:T(1,128)}', space=vmem, size = 0x12000, scoped, tag = 'internal scratch']
  %s0 = inlined_call_operand.hbm [shape: f32[8,32], index: 0, kind: input, shape index: {}]
  %s1 = inlined_call_operand.hbm [shape: bf16[5,128,128], index: 1, kind: input, shape index: {}]
  %s2 = inlined_call_operand.hbm [shape: f32[8,128], index: 2, kind: output, shape index: {}]
  %s3 = sld [smem:[#allocation0]]
  $region26: #{tpu_custom_call.1} parent=0
    _
  %s5 = ssub.s32 1, %s3
  %s6 = scalar_select 0, %s5, %s3
  $region1: #{tpu_custom_call.1} parent=0
    #allocation2 [shape = 'u8[4096]{0}', space=vmem, size = 0x1000, scoped, tag = 'input window, operand 0, single buffered']
    #allocation3 [shape = 's32[1]{0}', space=sflag, size = 0x4, scoped, tag = 'scoped memory for tpu_custom_call.1']
    #allocation4 [shape = 's32[1]{0}', space=sflag, size = 0x4, scoped, tag = 'scoped memory for tpu_custom_call.1']
    #allocation5 [shape = 'u8[163840]{0}', space=vmem, size = 0x28000, scoped, tag = 'input window, operand 1, single buffered']
    #allocation6 [shape = 's32[1]{0}', space=sflag, size = 0x4, scoped, tag = 'scoped memory for tpu_custom_call.1']
    #allocation7 [shape = 'u8[4096]{0}', space=vmem, size = 0x1000, scoped, tag = 'output window, operand 0, single buffered']
    %7 = vsyncpa [#allocation3], 0
    %8 = vsyncpa [#allocation6], 0
    %9 = vsyncpa [#allocation4], 0
    // Predicated region
    $region2: #{tpu_custom_call.1} parent=1 // pred_check
      _
    $region3: #{tpu_custom_call.1} parent=1 // pred_check_branch
      %11 = sbr.rel (0) target = $region5
    $region4: #{tpu_custom_call.1} parent=1 // pred_region
      %s13 = ssub.s32 128, 128
      %14 = vsyncadd [#allocation3], %s13
      %s16 = sshll.u32 [#allocation2], 4
      %s17 = int_to_ptr.vmem [resolvable:$true] %s16
      %19 = dma.hbm_to_vmem [thread:$0]  %s0, 128, %s17, [#allocation3]
    $region5: #{tpu_custom_call.1} parent=1 // pred_fallthru
      _
    // Predicated region
    $region6: #{tpu_custom_call.1} parent=1 // pred_check
      _
    $region7: #{tpu_custom_call.1} parent=1 // pred_check_branch
      %21 = sbr.rel (0) target = $region9
    $region8: #{tpu_custom_call.1} parent=1 // pred_region
      %s23 = ssub.s32 5120, 5120
      %24 = vsyncadd [#allocation6], %s23
      %s25 = sshll.u32 [#allocation5], 4
      %s26 = int_to_ptr.vmem [resolvable:$true] %s25
      %31 = dma.hbm_to_vmem [thread:$0]  %s1, 5120, %s26, [#allocation6], 64, 64, 4
    $region9: #{tpu_custom_call.1} parent=1 // pred_fallthru
      _
    // Predicated region
    $region10: #{tpu_custom_call.1} parent=1 // pred_check
      _
    $region11: #{tpu_custom_call.1} parent=1 // pred_check_branch
      %33 = sbr.rel (0) target = $region13
    $region12: #{tpu_custom_call.1} parent=1 // pred_region
      %34 = dma.done [#allocation3], 128
    $region13: #{tpu_custom_call.1} parent=1 // pred_fallthru
      _
    // Predicated region
    $region14: #{tpu_custom_call.1} parent=1 // pred_check
      _
    $region15: #{tpu_custom_call.1} parent=1 // pred_check_branch
      %36 = sbr.rel (0) target = $region17
    $region16: #{tpu_custom_call.1} parent=1 // pred_region
      %37 = dma.done [#allocation6], 5120
    $region17: #{tpu_custom_call.1} parent=1 // pred_fallthru
      _
    %v39 = vld [vmem:[#allocation2] sm:$0xff]
    %v40 = vpack.c.bf16 %v39, %v39
    %v41 = vld [vmem:[#allocation5] sm:$0xf]
    %v42 = vld [vmem:[#allocation5 + $0x4] sm:$0xf]
    %v43 = vld [vmem:[#allocation5 + $0x8] sm:$0xf]
    %v44 = vld [vmem:[#allocation5 + $0xc] sm:$0xf]
    %s45 = scalar_lea.vmem [#allocation5], 256
    %v46 = vld [vmem:[%s45 + $0x20] sm:$0x1]
    %v47 = vunpack.c.l.bf16 %v46
    %v48 = vlaneseq
    %v49 = vshrl.u32 %v48, 7
    %v50 = vsub.s32 0, %v49
    %v51 = vrot.slane %v47, %v50
    %v56 = vunpack.c.l.b16 %v41
    %v57 = vunpack.c.l.b16 %v42
    %v58 = vunpack.c.l.b16 %v43
    %v59 = vunpack.c.l.b16 %v44
    %v60 = vpack.c.b16 %v57, %v56
    %v61 = vpack.c.b16 %v59, %v58
    %vm64 = vcmask 261120
    %v66 = vsel %vm64, %v40, 0
    %68 = vmatprep.subr.bf16.mxu0 0
    %69 = vmatpush1.bf16.msra.mxu0 %v60
    %70 = vmatprep.subr.bf16.mxu0 0
    %71 = vmatpush1.bf16.msra.mxu0 %v61
    %72 = vmatprep.subr.bf16.mxu0 0
    %73 = vmatpush1.bf16.msra.mxu0 0
    %74 = vmatprep.subr.bf16.mxu0 0
    %75 = vmatpush1.bf16.msra.mxu0 0
    %76 = vmatprep.subr.bf16.mxu0 0
    %77 = vmatpush1.bf16.msra.mxu0 0
    %78 = vmatprep.subr.bf16.mxu0 0
    %79 = vmatpush1.bf16.msra.mxu0 0
    %80 = vmatprep.subr.bf16.mxu0 0
    %81 = vmatpush1.bf16.msra.mxu0 0
    %82 = vmatprep.subr.bf16.mxu0 0
    %83 = vmatpush1.bf16.msra.mxu0 0
    %84 = vmatprep.subr.bf16.mxu0 0
    %85 = vmatpush1.bf16.msra.mxu0 0
    %86 = vmatprep.subr.bf16.mxu0 0
    %87 = vmatpush1.bf16.msra.mxu0 0
    %88 = vmatprep.subr.bf16.mxu0 0
    %89 = vmatpush1.bf16.msra.mxu0 0
    %90 = vmatprep.subr.bf16.mxu0 0
    %91 = vmatpush1.bf16.msra.mxu0 0
    %92 = vmatprep.subr.bf16.mxu0 0
    %93 = vmatpush1.bf16.msra.mxu0 0
    %94 = vmatprep.subr.bf16.mxu0 0
    %95 = vmatpush1.bf16.msra.mxu0 0
    %96 = vmatprep.subr.bf16.mxu0 0
    %97 = vmatpush1.bf16.msra.mxu0 0
    %98 = vmatprep.subr.bf16.mxu0 0
    %99 = vmatpush1.bf16.msra.mxu0 0
    %100 = vmatprep.mubr.bf16.mxu0 0
    %101 = vmatmul.mubr.bf16.gmra.mrb[0].mxu0 %v66
    %v102 = vpop.f32.mrb[0].mxu0
    %v103 = vadd.f32 %v51, %v102
    %v104 = vpop.f32.mrb[0].mxu0
    %v105 = vpop.f32.mrb[0].mxu0
    %v106 = vpop.f32.mrb[0].mxu0
    %107 = vdwg.mxu0
    %v108 = vmax.f32 %v103, 0.0
    %v109 = vpack.c.bf16 %v108, %v108
    %s110 = scalar_lea.vmem [#allocation5], 64
    %v111 = vld [vmem:[%s110] sm:$0xf]
    %v112 = vld [vmem:[%s110 + $0x4] sm:$0xf]
    %v113 = vld [vmem:[%s110 + $0x8] sm:$0xf]
    %v114 = vld [vmem:[%s110 + $0xc] sm:$0xf]
    %v115 = vld [vmem:[%s110 + $0x10] sm:$0xf]
    %v116 = vld [vmem:[%s110 + $0x14] sm:$0xf]
    %v117 = vld [vmem:[%s110 + $0x18] sm:$0xf]
    %v118 = vld [vmem:[%s110 + $0x1c] sm:$0xf]
    %v119 = vld [vmem:[%s110 + $0x20] sm:$0xf]
    %v120 = vld [vmem:[%s110 + $0x24] sm:$0xf]
    %v121 = vld [vmem:[%s110 + $0x28] sm:$0xf]
    %v122 = vld [vmem:[%s110 + $0x2c] sm:$0xf]
    %v123 = vld [vmem:[%s110 + $0x30] sm:$0xf]
    %v124 = vld [vmem:[%s110 + $0x34] sm:$0xf]
    %v125 = vld [vmem:[%s110 + $0x38] sm:$0xf]
    %v126 = vld [vmem:[%s110 + $0x3c] sm:$0xf]
    %v127 = vlaneseq
    %v128 = vshrl.u32 %v127, 7
    %v129 = vsub.s32 1, %v128
    %v130 = vrot.slane %v47, %v129
    %v147 = vunpack.c.l.b16 %v111
    %v148 = vunpack.c.l.b16 %v112
    %v149 = vunpack.c.l.b16 %v113
    %v150 = vunpack.c.l.b16 %v114
    %v151 = vunpack.c.l.b16 %v115
    %v152 = vunpack.c.l.b16 %v116
    %v153 = vunpack.c.l.b16 %v117
    %v154 = vunpack.c.l.b16 %v118
    %v155 = vunpack.c.l.b16 %v119
    %v156 = vunpack.c.l.b16 %v120
    %v157 = vunpack.c.l.b16 %v121
    %v158 = vunpack.c.l.b16 %v122
    %v159 = vunpack.c.l.b16 %v123
    %v160 = vunpack.c.l.b16 %v124
    %v161 = vunpack.c.l.b16 %v125
    %v162 = vunpack.c.l.b16 %v126
    %v163 = vpack.c.b16 %v148, %v147
    %v164 = vpack.c.b16 %v150, %v149
    %v165 = vpack.c.b16 %v152, %v151
    %v166 = vpack.c.b16 %v154, %v153
    %v167 = vpack.c.b16 %v156, %v155
    %v168 = vpack.c.b16 %v158, %v157
    %v169 = vpack.c.b16 %v160, %v159
    %v170 = vpack.c.b16 %v162, %v161
    %179 = vmatprep.subr.bf16.mxu0 0
    %180 = vmatpush1.bf16.msra.mxu0 %v163
    %181 = vmatprep.subr.bf16.mxu0 0
    %182 = vmatpush1.bf16.msra.mxu0 %v164
    %183 = vmatprep.subr.bf16.mxu0 0
    %184 = vmatpush1.bf16.msra.mxu0 %v165
    %185 = vmatprep.subr.bf16.mxu0 0
    %186 = vmatpush1.bf16.msra.mxu0 %v166
    %187 = vmatprep.subr.bf16.mxu0 0
    %188 = vmatpush1.bf16.msra.mxu0 %v167
    %189 = vmatprep.subr.bf16.mxu0 0
    %190 = vmatpush1.bf16.msra.mxu0 %v168
    %191 = vmatprep.subr.bf16.mxu0 0
    %192 = vmatpush1.bf16.msra.mxu0 %v169
    %193 = vmatprep.subr.bf16.mxu0 0
    %194 = vmatpush1.bf16.msra.mxu0 %v170
    %195 = vmatprep.subr.bf16.mxu0 0
    %196 = vmatpush1.bf16.msra.mxu0 0
    %197 = vmatprep.subr.bf16.mxu0 0
    %198 = vmatpush1.bf16.msra.mxu0 0
    %199 = vmatprep.subr.bf16.mxu0 0
    %200 = vmatpush1.bf16.msra.mxu0 0
    %201 = vmatprep.subr.bf16.mxu0 0
    %202 = vmatpush1.bf16.msra.mxu0 0
    %203 = vmatprep.subr.bf16.mxu0 0
    %204 = vmatpush1.bf16.msra.mxu0 0
    %205 = vmatprep.subr.bf16.mxu0 0
    %206 = vmatpush1.bf16.msra.mxu0 0
    %207 = vmatprep.subr.bf16.mxu0 0
    %208 = vmatpush1.bf16.msra.mxu0 0
    %209 = vmatprep.subr.bf16.mxu0 0
    %210 = vmatpush1.bf16.msra.mxu0 0
    %211 = vmatprep.mubr.bf16.mxu0 0
    %212 = vmatmul.mubr.bf16.gmra.mrb[0].mxu0 %v109
    %v213 = vpop.f32.mrb[0].mxu0
    %v214 = vadd.f32 %v130, %v213
    %v215 = vpop.f32.mrb[0].mxu0
    %v216 = vpop.f32.mrb[0].mxu0
    %v217 = vpop.f32.mrb[0].mxu0
    %218 = vdwg.mxu0
    %v219 = vmax.f32 %v214, 0.0
    %v220 = vpack.c.bf16 %v219, %v219
    %s221 = scalar_lea.vmem [#allocation5], 128
    %v222 = vld [vmem:[%s221] sm:$0xf]
    %v223 = vld [vmem:[%s221 + $0x4] sm:$0xf]
    %v224 = vld [vmem:[%s221 + $0x8] sm:$0xf]
    %v225 = vld [vmem:[%s221 + $0xc] sm:$0xf]
    %v226 = vld [vmem:[%s221 + $0x10] sm:$0xf]
    %v227 = vld [vmem:[%s221 + $0x14] sm:$0xf]
    %v228 = vld [vmem:[%s221 + $0x18] sm:$0xf]
    %v229 = vld [vmem:[%s221 + $0x1c] sm:$0xf]
    %v230 = vld [vmem:[%s221 + $0x20] sm:$0xf]
    %v231 = vld [vmem:[%s221 + $0x24] sm:$0xf]
    %v232 = vld [vmem:[%s221 + $0x28] sm:$0xf]
    %v233 = vld [vmem:[%s221 + $0x2c] sm:$0xf]
    %v234 = vld [vmem:[%s221 + $0x30] sm:$0xf]
    %v235 = vld [vmem:[%s221 + $0x34] sm:$0xf]
    %v236 = vld [vmem:[%s221 + $0x38] sm:$0xf]
    %v237 = vld [vmem:[%s221 + $0x3c] sm:$0xf]
    %v238 = vld [vmem:[%s45 + $0x20] sm:$0x2]
    %v239 = vunpack.c.l.bf16 %v238
    %v240 = vlaneseq
    %v241 = vshrl.u32 %v240, 7
    %v242 = vsub.s32 2, %v241
    %v243 = vrot.slane %v239, %v242
    %v260 = vunpack.c.l.b16 %v222
    %v261 = vunpack.c.l.b16 %v223
    %v262 = vunpack.c.l.b16 %v224
    %v263 = vunpack.c.l.b16 %v225
    %v264 = vunpack.c.l.b16 %v226
    %v265 = vunpack.c.l.b16 %v227
    %v266 = vunpack.c.l.b16 %v228
    %v267 = vunpack.c.l.b16 %v229
    %v268 = vunpack.c.l.b16 %v230
    %v269 = vunpack.c.l.b16 %v231
    %v270 = vunpack.c.l.b16 %v232
    %v271 = vunpack.c.l.b16 %v233
    %v272 = vunpack.c.l.b16 %v234
    %v273 = vunpack.c.l.b16 %v235
    %v274 = vunpack.c.l.b16 %v236
    %v275 = vunpack.c.l.b16 %v237
    %v276 = vpack.c.b16 %v261, %v260
    %v277 = vpack.c.b16 %v263, %v262
    %v278 = vpack.c.b16 %v265, %v264
    %v279 = vpack.c.b16 %v267, %v266
    %v280 = vpack.c.b16 %v269, %v268
    %v281 = vpack.c.b16 %v271, %v270
    %v282 = vpack.c.b16 %v273, %v272
    %v283 = vpack.c.b16 %v275, %v274
    %292 = vmatprep.subr.bf16.mxu0 0
    %293 = vmatpush1.bf16.msra.mxu0 %v276
    %294 = vmatprep.subr.bf16.mxu0 0
    %295 = vmatpush1.bf16.msra.mxu0 %v277
    %296 = vmatprep.subr.bf16.mxu0 0
    %297 = vmatpush1.bf16.msra.mxu0 %v278
    %298 = vmatprep.subr.bf16.mxu0 0
    %299 = vmatpush1.bf16.msra.mxu0 %v279
    %300 = vmatprep.subr.bf16.mxu0 0
    %301 = vmatpush1.bf16.msra.mxu0 %v280
    %302 = vmatprep.subr.bf16.mxu0 0
    %303 = vmatpush1.bf16.msra.mxu0 %v281
    %304 = vmatprep.subr.bf16.mxu0 0
    %305 = vmatpush1.bf16.msra.mxu0 %v282
    %306 = vmatprep.subr.bf16.mxu0 0
    %307 = vmatpush1.bf16.msra.mxu0 %v283
    %308 = vmatprep.subr.bf16.mxu0 0
    %309 = vmatpush1.bf16.msra.mxu0 0
    %310 = vmatprep.subr.bf16.mxu0 0
    %311 = vmatpush1.bf16.msra.mxu0 0
    %312 = vmatprep.subr.bf16.mxu0 0
    %313 = vmatpush1.bf16.msra.mxu0 0
    %314 = vmatprep.subr.bf16.mxu0 0
    %315 = vmatpush1.bf16.msra.mxu0 0
    %316 = vmatprep.subr.bf16.mxu0 0
    %317 = vmatpush1.bf16.msra.mxu0 0
    %318 = vmatprep.subr.bf16.mxu0 0
    %319 = vmatpush1.bf16.msra.mxu0 0
    %320 = vmatprep.subr.bf16.mxu0 0
    %321 = vmatpush1.bf16.msra.mxu0 0
    %322 = vmatprep.subr.bf16.mxu0 0
    %323 = vmatpush1.bf16.msra.mxu0 0
    %324 = vmatprep.mubr.bf16.mxu0 0
    %325 = vmatmul.mubr.bf16.gmra.mrb[0].mxu0 %v220
    %v326 = vpop.f32.mrb[0].mxu0
    %v327 = vadd.f32 %v243, %v326
    %v328 = vpop.f32.mrb[0].mxu0
    %v329 = vpop.f32.mrb[0].mxu0
    %v330 = vpop.f32.mrb[0].mxu0
    %331 = vdwg.mxu0
    %v332 = vmax.f32 %v327, 0.0
    %v333 = vpack.c.bf16 %v332, %v332
    %s334 = scalar_lea.vmem [#allocation5], 192
    %v335 = vld [vmem:[%s334] sm:$0xf]
    %v336 = vld [vmem:[%s334 + $0x4] sm:$0xf]
    %v337 = vld [vmem:[%s334 + $0x8] sm:$0xf]
    %v338 = vld [vmem:[%s334 + $0xc] sm:$0xf]
    %v339 = vld [vmem:[%s334 + $0x10] sm:$0xf]
    %v340 = vld [vmem:[%s334 + $0x14] sm:$0xf]
    %v341 = vld [vmem:[%s334 + $0x18] sm:$0xf]
    %v342 = vld [vmem:[%s334 + $0x1c] sm:$0xf]
    %v343 = vld [vmem:[%s334 + $0x20] sm:$0xf]
    %v344 = vld [vmem:[%s334 + $0x24] sm:$0xf]
    %v345 = vld [vmem:[%s334 + $0x28] sm:$0xf]
    %v346 = vld [vmem:[%s334 + $0x2c] sm:$0xf]
    %v347 = vld [vmem:[%s334 + $0x30] sm:$0xf]
    %v348 = vld [vmem:[%s334 + $0x34] sm:$0xf]
    %v349 = vld [vmem:[%s334 + $0x38] sm:$0xf]
    %v350 = vld [vmem:[%s334 + $0x3c] sm:$0xf]
    %v351 = vlaneseq
    %v352 = vshrl.u32 %v351, 7
    %v353 = vsub.s32 3, %v352
    %v354 = vrot.slane %v239, %v353
    %v371 = vunpack.c.l.b16 %v335
    %v372 = vunpack.c.l.b16 %v336
    %v373 = vunpack.c.l.b16 %v337
    %v374 = vunpack.c.l.b16 %v338
    %v375 = vunpack.c.l.b16 %v339
    %v376 = vunpack.c.l.b16 %v340
    %v377 = vunpack.c.l.b16 %v341
    %v378 = vunpack.c.l.b16 %v342
    %v379 = vunpack.c.l.b16 %v343
    %v380 = vunpack.c.l.b16 %v344
    %v381 = vunpack.c.l.b16 %v345
    %v382 = vunpack.c.l.b16 %v346
    %v383 = vunpack.c.l.b16 %v347
    %v384 = vunpack.c.l.b16 %v348
    %v385 = vunpack.c.l.b16 %v349
    %v386 = vunpack.c.l.b16 %v350
    %v387 = vpack.c.b16 %v372, %v371
    %v388 = vpack.c.b16 %v374, %v373
    %v389 = vpack.c.b16 %v376, %v375
    %v390 = vpack.c.b16 %v378, %v377
    %v391 = vpack.c.b16 %v380, %v379
    %v392 = vpack.c.b16 %v382, %v381
    %v393 = vpack.c.b16 %v384, %v383
    %v394 = vpack.c.b16 %v386, %v385
    %403 = vmatprep.subr.bf16.mxu0 0
    %404 = vmatpush1.bf16.msra.mxu0 %v387
    %405 = vmatprep.subr.bf16.mxu0 0
    %406 = vmatpush1.bf16.msra.mxu0 %v388
    %407 = vmatprep.subr.bf16.mxu0 0
    %408 = vmatpush1.bf16.msra.mxu0 %v389
    %409 = vmatprep.subr.bf16.mxu0 0
    %410 = vmatpush1.bf16.msra.mxu0 %v390
    %411 = vmatprep.subr.bf16.mxu0 0
    %412 = vmatpush1.bf16.msra.mxu0 %v391
    %413 = vmatprep.subr.bf16.mxu0 0
    %414 = vmatpush1.bf16.msra.mxu0 %v392
    %415 = vmatprep.subr.bf16.mxu0 0
    %416 = vmatpush1.bf16.msra.mxu0 %v393
    %417 = vmatprep.subr.bf16.mxu0 0
    %418 = vmatpush1.bf16.msra.mxu0 %v394
    %419 = vmatprep.subr.bf16.mxu0 0
    %420 = vmatpush1.bf16.msra.mxu0 0
    %421 = vmatprep.subr.bf16.mxu0 0
    %422 = vmatpush1.bf16.msra.mxu0 0
    %423 = vmatprep.subr.bf16.mxu0 0
    %424 = vmatpush1.bf16.msra.mxu0 0
    %425 = vmatprep.subr.bf16.mxu0 0
    %426 = vmatpush1.bf16.msra.mxu0 0
    %427 = vmatprep.subr.bf16.mxu0 0
    %428 = vmatpush1.bf16.msra.mxu0 0
    %429 = vmatprep.subr.bf16.mxu0 0
    %430 = vmatpush1.bf16.msra.mxu0 0
    %431 = vmatprep.subr.bf16.mxu0 0
    %432 = vmatpush1.bf16.msra.mxu0 0
    %433 = vmatprep.subr.bf16.mxu0 0
    %434 = vmatpush1.bf16.msra.mxu0 0
    %435 = vmatprep.mubr.bf16.mxu0 0
    %436 = vmatmul.mubr.bf16.gmra.mrb[0].mxu0 %v333
    %v437 = vpop.f32.mrb[0].mxu0
    %v438 = vadd.f32 %v354, %v437
    %v439 = vpop.f32.mrb[0].mxu0
    %v440 = vpop.f32.mrb[0].mxu0
    %v441 = vpop.f32.mrb[0].mxu0
    %442 = vdwg.mxu0
    %v443 = vmax.f32 %v438, 0.0
    %v444 = vpack.c.bf16 %v443, %v443
    %v445 = vld [vmem:[%s45] sm:$0xf]
    %v446 = vld [vmem:[%s45 + $0x4] sm:$0xf]
    %v447 = vld [vmem:[%s45 + $0x8] sm:$0xf]
    %v448 = vld [vmem:[%s45 + $0xc] sm:$0xf]
    %v449 = vld [vmem:[%s45 + $0x10] sm:$0xf]
    %v450 = vld [vmem:[%s45 + $0x14] sm:$0xf]
    %v451 = vld [vmem:[%s45 + $0x18] sm:$0xf]
    %v452 = vld [vmem:[%s45 + $0x1c] sm:$0xf]
    %v453 = vld [vmem:[%s45 + $0x20] sm:$0xf]
    %v454 = vld [vmem:[%s45 + $0x24] sm:$0xf]
    %v455 = vld [vmem:[%s45 + $0x28] sm:$0xf]
    %v456 = vld [vmem:[%s45 + $0x2c] sm:$0xf]
    %v457 = vld [vmem:[%s45 + $0x30] sm:$0xf]
    %v458 = vld [vmem:[%s45 + $0x34] sm:$0xf]
    %v459 = vld [vmem:[%s45 + $0x38] sm:$0xf]
    %v460 = vld [vmem:[%s45 + $0x3c] sm:$0xf]
    %v461 = vld [vmem:[%s45 + $0x20] sm:$0x4]
    %v462 = vunpack.c.l.bf16 %v461
    %v463 = vlaneseq
    %v464 = vshrl.u32 %v463, 7
    %v465 = vsub.s32 4, %v464
    %v466 = vrot.slane %v462, %v465
    %v483 = vunpack.c.l.b16 %v445
    %v484 = vunpack.c.l.b16 %v446
    %v485 = vunpack.c.l.b16 %v447
    %v486 = vunpack.c.l.b16 %v448
    %v487 = vunpack.c.l.b16 %v449
    %v488 = vunpack.c.l.b16 %v450
    %v489 = vunpack.c.l.b16 %v451
    %v490 = vunpack.c.l.b16 %v452
    %v491 = vunpack.c.l.b16 %v453
    %v492 = vunpack.c.l.b16 %v454
    %v493 = vunpack.c.l.b16 %v455
    %v494 = vunpack.c.l.b16 %v456
    %v495 = vunpack.c.l.b16 %v457
    %v496 = vunpack.c.l.b16 %v458
    %v497 = vunpack.c.l.b16 %v459
    %v498 = vunpack.c.l.b16 %v460
    %v499 = vpack.c.b16 %v484, %v483
    %v500 = vpack.c.b16 %v486, %v485
    %v501 = vpack.c.b16 %v488, %v487
    %v502 = vpack.c.b16 %v490, %v489
    %v503 = vpack.c.b16 %v492, %v491
    %v504 = vpack.c.b16 %v494, %v493
    %v505 = vpack.c.b16 %v496, %v495
    %v506 = vpack.c.b16 %v498, %v497
    %515 = vmatprep.subr.bf16.mxu0 0
    %516 = vmatpush1.bf16.msra.mxu0 %v499
    %517 = vmatprep.subr.bf16.mxu0 0
    %518 = vmatpush1.bf16.msra.mxu0 %v500
    %519 = vmatprep.subr.bf16.mxu0 0
    %520 = vmatpush1.bf16.msra.mxu0 %v501
    %521 = vmatprep.subr.bf16.mxu0 0
    %522 = vmatpush1.bf16.msra.mxu0 %v502
    %523 = vmatprep.subr.bf16.mxu0 0
    %524 = vmatpush1.bf16.msra.mxu0 %v503
    %525 = vmatprep.subr.bf16.mxu0 0
    %526 = vmatpush1.bf16.msra.mxu0 %v504
    %527 = vmatprep.subr.bf16.mxu0 0
    %528 = vmatpush1.bf16.msra.mxu0 %v505
    %529 = vmatprep.subr.bf16.mxu0 0
    %530 = vmatpush1.bf16.msra.mxu0 %v506
    %531 = vmatprep.subr.bf16.mxu0 0
    %532 = vmatpush1.bf16.msra.mxu0 0
    %533 = vmatprep.subr.bf16.mxu0 0
    %534 = vmatpush1.bf16.msra.mxu0 0
    %535 = vmatprep.subr.bf16.mxu0 0
    %536 = vmatpush1.bf16.msra.mxu0 0
    %537 = vmatprep.subr.bf16.mxu0 0
    %538 = vmatpush1.bf16.msra.mxu0 0
    %539 = vmatprep.subr.bf16.mxu0 0
    %540 = vmatpush1.bf16.msra.mxu0 0
    %541 = vmatprep.subr.bf16.mxu0 0
    %542 = vmatpush1.bf16.msra.mxu0 0
    %543 = vmatprep.subr.bf16.mxu0 0
    %544 = vmatpush1.bf16.msra.mxu0 0
    %545 = vmatprep.subr.bf16.mxu0 0
    %546 = vmatpush1.bf16.msra.mxu0 0
    %547 = vmatprep.mubr.bf16.mxu0 0
    %548 = vmatmul.mubr.bf16.gmra.mrb[0].mxu0 %v444
    %v549 = vpop.f32.mrb[0].mxu0
    %v550 = vadd.f32 %v466, %v549
    %v551 = vpop.f32.mrb[0].mxu0
    %v552 = vpop.f32.mrb[0].mxu0
    %v553 = vpop.f32.mrb[0].mxu0
    %554 = vdwg.mxu0
    %555 = vst [vmem:[#allocation7] sm:$0xff] %v550
    // Predicated region
    $region18: #{tpu_custom_call.1} parent=1 // pred_check
      _
    $region19: #{tpu_custom_call.1} parent=1 // pred_check_branch
      %557 = sbr.rel (0) target = $region21
    $region20: #{tpu_custom_call.1} parent=1 // pred_region
      %s559 = ssub.s32 128, 128
      %560 = vsyncadd [#allocation4], %s559
      %s562 = sshll.u32 [#allocation7], 4
      %s563 = int_to_ptr.vmem [resolvable:$true] %s562
      %565 = dma.vmem_to_hbm [thread:$0]  %s563, 128, %s2, [#allocation4]
    $region21: #{tpu_custom_call.1} parent=1 // pred_fallthru
      _
    // Predicated region
    $region22: #{tpu_custom_call.1} parent=1 // pred_check
      _
    $region23: #{tpu_custom_call.1} parent=1 // pred_check_branch
      %567 = sbr.rel (0) target = $region25
    $region24: #{tpu_custom_call.1} parent=1 // pred_region
      %568 = dma.done [#allocation4], 128
    $region25: #{tpu_custom_call.1} parent=1 // pred_fallthru
      _
    %569 = vsyncpa [#allocation3], 1
    %570 = vsyncpa [#allocation6], 1
    %571 = vsyncpa [#allocation4], 1

</llo_original>
